<compile_context>
chip_gen: v5e
topology: v5e:2x2
jax: 0.10.0
libtpu: 0.0.40
codegen_flags: <defaults>
</compile_context>

<pallas_src>
import functools

import jax
import jax.numpy as jnp
from jax.experimental import pallas as pl
from jax.experimental.pallas import tpu as pltpu


# ---------------------------------------------------------------------------
# Kernel: normalize one sample.  x_ref is (1, G, cpg, H*W) with H*W in lanes;
# gamma/beta are (G, cpg, 1) per-channel columns (broadcast along lanes).
# ---------------------------------------------------------------------------
def _rgn_kernel(x_ref, gamma_ref, beta_ref, o_ref, *, cpg, hw, eps):
    x = x_ref[...].astype(jnp.float32)                       # stats in f32
    cnt = float(cpg * hw)

    s = jnp.sum(x, axis=3, keepdims=True)                    # lane reduce
    s = jnp.sum(s, axis=2, keepdims=True)                    # sublane reduce -> (1, G, 1, 1)
    mean = s * (1.0 / cnt)

    d = x - mean
    s2 = jnp.sum(d * d, axis=3, keepdims=True)
    s2 = jnp.sum(s2, axis=2, keepdims=True)
    var = s2 * (1.0 / (cnt - 1.0))                           # unbiased: torch.var default

    y = d * jax.lax.rsqrt(var + eps)
    y = y * gamma_ref[...][None] + beta_ref[...][None]       # per-channel affine
    o_ref[...] = y.astype(o_ref.dtype)


# ---------------------------------------------------------------------------
# Wrapper: RenormGroupNorm.forward (default scale == 0 path)
# ---------------------------------------------------------------------------
def renorm_group_norm(x, gamma, beta, *, num_groups, scale=0, eps=1e-5):
    """x: (N, C, H, W); gamma/beta: PyTorch-layout (1, C, 1, 1) parameters."""
    # TODO(synk): the scale > 0 branch of the reference mutates module state across
    # calls (doubles num_groups AND channels_per_group, so its .view() no longer
    # matches num_channels); it has no stateless equivalent — scale == 0 only.
    assert scale == 0
    n, c, h, w = x.shape
    g = num_groups
    assert c % g == 0
    cpg = c // g
    hw = h * w

    # Reference resets gamma/beta to 1/0 before applying them when
    # scale % num_groups == 0 (always true for the default scale == 0).
    if scale % g == 0:
        gamma = jnp.ones((c,), jnp.float32)
        beta = jnp.zeros((c,), jnp.float32)
    gamma3 = jnp.asarray(gamma, jnp.float32).reshape(g, cpg, 1)
    beta3 = jnp.asarray(beta, jnp.float32).reshape(g, cpg, 1)

    # Contiguous (free) relayout: groups become an outer dim, H*W sits in lanes.
    x4 = x.reshape(n, g, cpg, hw)

    kernel = functools.partial(_rgn_kernel, cpg=cpg, hw=hw, eps=float(eps))
    out = pl.pallas_call(
        kernel,
        out_shape=jax.ShapeDtypeStruct((n, g, cpg, hw), x.dtype),
        grid=(n,),
        in_specs=[
            pl.BlockSpec((1, g, cpg, hw), lambda b: (b, 0, 0, 0)),
            pl.BlockSpec((g, cpg, 1), lambda b: (0, 0, 0)),
            pl.BlockSpec((g, cpg, 1), lambda b: (0, 0, 0)),
        ],
        out_specs=pl.BlockSpec((1, g, cpg, hw), lambda b: (b, 0, 0, 0)),
        compiler_params=pltpu.CompilerParams(dimension_semantics=("parallel",)),
    )(x4, gamma3, beta3)
    return out.reshape(n, c, h, w)


# ---------------------------------------------------------------------------
# Pure-JAX reference mirroring the PyTorch forward (for a correctness check)
# ---------------------------------------------------------------------------
def _reference_forward(x, gamma, beta, *, num_groups, scale=0, eps=1e-5):
    n, c, h, w = x.shape
    g = num_groups
    cpg = c // g
    xg = x.reshape(n, g, cpg, h, w).astype(jnp.float32)
    mean = jnp.mean(xg, axis=(2, 3, 4), keepdims=True)
    var = jnp.sum((xg - mean) ** 2, axis=(2, 3, 4), keepdims=True) / (cpg * h * w - 1)
    y = ((xg - mean) / jnp.sqrt(var + eps)).reshape(n, c, h, w)
    if scale % g == 0:
        gamma = jnp.ones((1, c, 1, 1), jnp.float32)
        beta = jnp.zeros((1, c, 1, 1), jnp.float32)
    return (y * jnp.reshape(gamma, (1, c, 1, 1)) + jnp.reshape(beta, (1, c, 1, 1))).astype(x.dtype)


if __name__ == "__main__":
    key = jax.random.PRNGKey(0)
    kx, kg, kb, kx2 = jax.random.split(key, 4)

    # Config 1: small standalone shape (matches the module's standalone use).
    N, C, H, W = 2, 4, 16, 16
    NUM_GROUPS = 2                       # channels_per_group = 2
    x = jax.random.normal(kx, (N, C, H, W), jnp.float32)
    gamma = jax.random.normal(kg, (1, C, 1, 1), jnp.float32)   # reset to 1/0 by scale==0 path
    beta = jax.random.normal(kb, (1, C, 1, 1), jnp.float32)

    out = renorm_group_norm(x, gamma, beta, num_groups=NUM_GROUPS, scale=0, eps=1e-5)
    out = jax.block_until_ready(out)
    assert out.shape == (N, C, H, W)
    ref = _reference_forward(x, gamma, beta, num_groups=NUM_GROUPS, scale=0, eps=1e-5)
    err = float(jnp.max(jnp.abs(out - ref)))
    assert err < 1e-4, f"config1 max abs error {err}"

    # Config 2: the shape class used inside the WideResNet blocks
    # (C=64, num_groups=C//2) to exercise many small groups.
    N2, C2, H2, W2, G2 = 2, 64, 8, 8, 32
    x2 = jax.random.normal(kx2, (N2, C2, H2, W2), jnp.float32)
    g2 = jnp.ones((1, C2, 1, 1), jnp.float32)
    b2 = jnp.zeros((1, C2, 1, 1), jnp.float32)
    out2 = jax.block_until_ready(
        renorm_group_norm(x2, g2, b2, num_groups=G2, scale=0, eps=1e-5))
    ref2 = _reference_forward(x2, g2, b2, num_groups=G2, scale=0, eps=1e-5)
    err2 = float(jnp.max(jnp.abs(out2 - ref2)))
    assert err2 < 1e-4, f"config2 max abs error {err2}"

    print("KERNEL_OK")
</pallas_src>

<mosaic_0001>
module attributes {stable_mosaic.version = 11 : i64} {
  func.func @_rgn_kernel(%arg0: i32, %arg1: memref<1x2x2x256xf32, #tpu.memory_space<vmem>>, %arg2: memref<2x2x1xf32, #tpu.memory_space<vmem>>, %arg3: memref<2x2x1xf32, #tpu.memory_space<vmem>>, %arg4: memref<1x2x2x256xf32, #tpu.memory_space<vmem>>) attributes {dimension_semantics = [#tpu.dimension_semantics<parallel>], iteration_bounds = array<i64: 2>, scalar_prefetch = 0 : i64, scratch_operands = 0 : i64, tpu.core_type = #tpu.core_type<tc>, window_params = [{transform_indices = @transform_0, window_bounds = array<i64: 1, 2, 2, 256>}, {pipeline_mode = #tpu.pipeline_mode<synchronous>, transform_indices = @transform_1, window_bounds = array<i64: 2, 2, 1>}, {pipeline_mode = #tpu.pipeline_mode<synchronous>, transform_indices = @transform_2, window_bounds = array<i64: 2, 2, 1>}, {transform_indices = @transform_3, window_bounds = array<i64: 1, 2, 2, 256>}]} {
    %c0 = arith.constant 0 : index
    %c0_0 = arith.constant 0 : index
    %c0_1 = arith.constant 0 : index
    %c0_2 = arith.constant 0 : index
    %0 = vector.load %arg1[%c0, %c0_0, %c0_1, %c0_2] : memref<1x2x2x256xf32, #tpu.memory_space<vmem>>, vector<1x2x2x256xf32>
    %cst = arith.constant dense<0.000000e+00> : vector<1x2x2xf32>
    %1 = vector.multi_reduction <add>, %0, %cst [3] : vector<1x2x2x256xf32> to vector<1x2x2xf32>
    %2 = vector.shape_cast %1 : vector<1x2x2xf32> to vector<1x2x2x1xf32>
    %cst_3 = arith.constant dense<0.000000e+00> : vector<1x2x1xf32>
    %3 = vector.multi_reduction <add>, %2, %cst_3 [2] : vector<1x2x2x1xf32> to vector<1x2x1xf32>
    %4 = vector.shape_cast %3 : vector<1x2x1xf32> to vector<1x2x1x1xf32>
    %cst_4 = arith.constant 0.001953125 : f32
    %5 = vector.broadcast %cst_4 : f32 to vector<1x2x1x1xf32>
    %6 = arith.mulf %4, %5 : vector<1x2x1x1xf32>
    %7 = vector.broadcast %6 : vector<1x2x1x1xf32> to vector<1x2x2x256xf32>
    %8 = arith.subf %0, %7 : vector<1x2x2x256xf32>
    %9 = arith.mulf %8, %8 : vector<1x2x2x256xf32>
    %cst_5 = arith.constant dense<0.000000e+00> : vector<1x2x2xf32>
    %10 = vector.multi_reduction <add>, %9, %cst_5 [3] : vector<1x2x2x256xf32> to vector<1x2x2xf32>
    %11 = vector.shape_cast %10 : vector<1x2x2xf32> to vector<1x2x2x1xf32>
    %cst_6 = arith.constant dense<0.000000e+00> : vector<1x2x1xf32>
    %12 = vector.multi_reduction <add>, %11, %cst_6 [2] : vector<1x2x2x1xf32> to vector<1x2x1xf32>
    %13 = vector.shape_cast %12 : vector<1x2x1xf32> to vector<1x2x1x1xf32>
    %cst_7 = arith.constant 0.00195694715 : f32
    %14 = vector.broadcast %cst_7 : f32 to vector<1x2x1x1xf32>
    %15 = arith.mulf %13, %14 : vector<1x2x1x1xf32>
    %cst_8 = arith.constant 9.99999974E-6 : f32
    %16 = vector.broadcast %cst_8 : f32 to vector<1x2x1x1xf32>
    %17 = arith.addf %15, %16 : vector<1x2x1x1xf32>
    %18 = math.rsqrt %17 : vector<1x2x1x1xf32>
    %19 = vector.broadcast %18 : vector<1x2x1x1xf32> to vector<1x2x2x256xf32>
    %20 = arith.mulf %8, %19 : vector<1x2x2x256xf32>
    %c0_9 = arith.constant 0 : index
    %c0_10 = arith.constant 0 : index
    %c0_11 = arith.constant 0 : index
    %21 = vector.load %arg2[%c0_9, %c0_10, %c0_11] : memref<2x2x1xf32, #tpu.memory_space<vmem>>, vector<2x2x1xf32>
    %22 = vector.shape_cast %21 : vector<2x2x1xf32> to vector<1x2x2x1xf32>
    %23 = vector.broadcast %22 : vector<1x2x2x1xf32> to vector<1x2x2x256xf32>
    %24 = arith.mulf %20, %23 : vector<1x2x2x256xf32>
    %c0_12 = arith.constant 0 : index
    %c0_13 = arith.constant 0 : index
    %c0_14 = arith.constant 0 : index
    %25 = vector.load %arg3[%c0_12, %c0_13, %c0_14] : memref<2x2x1xf32, #tpu.memory_space<vmem>>, vector<2x2x1xf32>
    %26 = vector.shape_cast %25 : vector<2x2x1xf32> to vector<1x2x2x1xf32>
    %27 = vector.broadcast %26 : vector<1x2x2x1xf32> to vector<1x2x2x256xf32>
    %28 = arith.addf %24, %27 : vector<1x2x2x256xf32>
    %c0_15 = arith.constant 0 : index
    %c0_16 = arith.constant 0 : index
    %c0_17 = arith.constant 0 : index
    %c0_18 = arith.constant 0 : index
    %29 = vector.load %arg4[%c0_15, %c0_16, %c0_17, %c0_18] : memref<1x2x2x256xf32, #tpu.memory_space<vmem>>, vector<1x2x2x256xf32>
    tpu.vector_store %arg4[%c0_15, %c0_16, %c0_17, %c0_18], %28 {strides = array<i32>} : memref<1x2x2x256xf32, #tpu.memory_space<vmem>>, vector<1x2x2x256xf32>,
    return
  }
  func.func @transform_0(%arg0: i32) -> (i32, i32, i32, i32) {
    %c0_i32 = arith.constant 0 : i32
    %c0_i32_0 = arith.constant 0 : i32
    %c0_i32_1 = arith.constant 0 : i32
    %c0_i32_2 = arith.constant 0 : i32
    return %arg0, %c0_i32, %c0_i32_0, %c0_i32_1 : i32, i32, i32, i32
  }
  func.func @transform_1(%arg0: i32) -> (i32, i32, i32) {
    %c0_i32 = arith.constant 0 : i32
    %c0_i32_0 = arith.constant 0 : i32
    %c0_i32_1 = arith.constant 0 : i32
    %c0_i32_2 = arith.constant 0 : i32
    return %c0_i32, %c0_i32_0, %c0_i32_1 : i32, i32, i32
  }
  func.func @transform_2(%arg0: i32) -> (i32, i32, i32) {
    %c0_i32 = arith.constant 0 : i32
    %c0_i32_0 = arith.constant 0 : i32
    %c0_i32_1 = arith.constant 0 : i32
    %c0_i32_2 = arith.constant 0 : i32
    return %c0_i32, %c0_i32_0, %c0_i32_1 : i32, i32, i32
  }
  func.func @transform_3(%arg0: i32) -> (i32, i32, i32, i32) {
    %c0_i32 = arith.constant 0 : i32
    %c0_i32_0 = arith.constant 0 : i32
    %c0_i32_1 = arith.constant 0 : i32
    %c0_i32_2 = arith.constant 0 : i32
    return %arg0, %c0_i32, %c0_i32_0, %c0_i32_1 : i32, i32, i32, i32
  }
}

</mosaic_0001>

<llo_original>
// kernel: tpu_custom_call.1
$region0: #{tpu_custom_call.1}
  #allocation0 [shape = 'u32[]', space=smem, size = 0x4, offset = 0x4, fixed_abs, tag = 'smem constant byte address 0x4 - core index']
  #allocation1 [shape = 'u32[72,128]{1,0:T(1,128)}', space=vmem, size = 0x9000, scoped, tag = 'internal scratch']
  %s0 = inlined_call_operand.hbm [shape: f32[2,2,2,256], index: 0, kind: input, shape index: {}]
  %s1 = inlined_call_operand.vmem [shape: f32[2,2,1], index: 1, kind: input, shape index: {}]
  %s2 = inlined_call_operand.vmem [shape: f32[2,2,1], index: 2, kind: input, shape index: {}]
  %s3 = inlined_call_operand.hbm [shape: f32[2,2,2,256], index: 3, kind: output, shape index: {}]
  %s4 = sld [smem:[#allocation0]]
  $region49: #{tpu_custom_call.1} parent=0
    _
  %s6 = ssub.s32 1, %s4
  %s7 = scalar_select 0, %s6, %s4
  $region1: #{tpu_custom_call.1} parent=0
    #allocation2 [shape = 'u8[8192]{0}', space=vmem, size = 0x2000, scoped, tag = 'input window, operand 0']
    #allocation3 [shape = 's32[2]{0}', space=sflag, size = 0x8, scoped, tag = 'scoped memory for tpu_custom_call.1']
    #allocation4 [shape = 's32[2]{0}', space=sflag, size = 0x8, scoped, tag = 'scoped memory for tpu_custom_call.1']
    #allocation5 [shape = 'u8[8192]{0}', space=vmem, size = 0x2000, scoped, tag = 'output window, operand 0']
    %8 = vsyncpa [#allocation3], 0
    %s9 = scalar_lea.sflag [#allocation3], 1
    %10 = vsyncpa %s9, 0
    %11 = vsyncpa [#allocation4], 0
    %s12 = scalar_lea.sflag [#allocation4], 1
    %13 = vsyncpa %s12, 0
    loop: start=0, step=1, limit=4
    $region2: #{tpu_custom_call.1} parent=1 // loop_pre_header
      _
    $region3: #{tpu_custom_call.1} parent=1 // loop_header
      %s15 = sphi 0, %s19
      %p16 = scmp.ge.s32.totalorder %s15, 4
      %s25 = sphi 0, %s27
      %s28 = sphi 0, %s25
      %s29 = sphi 0, %s28
      %s45 = sphi 0, %s29
      %s49 = sphi 0, %s49
      %s51 = sphi 0, %s49
      %s52 = sphi 0, %s51
      %s66 = sphi 0, %s52
      %s70 = sphi 0, %s70
      %s72 = sphi 0, %s70
      %s73 = sphi 0, %s72
      %s87 = sphi 0, %s73
      %s93 = sphi 0, %s95
      %s96 = sphi 0, %s93
      %s97 = sphi 0, %s96
      %s113 = sphi 0, %s97
    $region4: #{tpu_custom_call.1} parent=1 // loop_header_branch
      %18 = sbr.rel (%p16) target = $region8
    $region5: #{tpu_custom_call.1} parent=1 // loop_body
      %s20 = ssub.s32 %s15, 1
      %s21 = ssub.s32 %s15, 2
      %s22 = sadd.s32 %s15, 1
      %s23 = ssub.s32 %s15, %s22
      %p24 = scmp.eq.s32.totalorder %s23, 0
      %s26 = sadd.s32 %s25, 1
      %s27 = scalar_select %p24, %s25, %s26
      %p30 = pneg %p24
      %p31 = scmp.eq.s32.totalorder %s15, 1
      %p32 = por %p30, %p31
      %p33 = scmp.ne.s32.totalorder %s25, %s28
      %p34 = scmp.eq.s32.totalorder %s15, 0
      %p35 = por %p33, %p34
      %p36 = scmp.ne.s32.totalorder %s25, %s28
      %p37 = scmp.eq.s32.totalorder %s20, 1
      %p38 = por %p36, %p37
      %p39 = scmp.ne.s32.totalorder %s28, %s29
      %p40 = scmp.eq.s32.totalorder %s20, 0
      %p41 = por %p39, %p40
      %p42 = scmp.ne.s32.totalorder %s28, %s29
      %p43 = scmp.eq.s32.totalorder %s21, 1
      %p44 = por %p42, %p43
      %p46 = scmp.ne.s32.totalorder %s29, %s45
      %p47 = scmp.eq.s32.totalorder %s21, 0
      %p48 = por %p46, %p47
      %s50 = sadd.s32 %s49, 1
      %p53 = scmp.eq.s32.totalorder %s15, 1
      %p54 = scmp.ne.s32.totalorder %s49, %s51
      %p55 = scmp.eq.s32.totalorder %s15, 0
      %p56 = por %p54, %p55
      %p57 = scmp.ne.s32.totalorder %s49, %s51
      %p58 = scmp.eq.s32.totalorder %s20, 1
      %p59 = por %p57, %p58
      %p60 = scmp.ne.s32.totalorder %s51, %s52
      %p61 = scmp.eq.s32.totalorder %s20, 0
      %p62 = por %p60, %p61
      %p63 = scmp.ne.s32.totalorder %s51, %s52
      %p64 = scmp.eq.s32.totalorder %s21, 1
      %p65 = por %p63, %p64
      %p67 = scmp.ne.s32.totalorder %s52, %s66
      %p68 = scmp.eq.s32.totalorder %s21, 0
      %p69 = por %p67, %p68
      %s71 = sadd.s32 %s70, 1
      %p74 = scmp.eq.s32.totalorder %s15, 1
      %p75 = scmp.ne.s32.totalorder %s70, %s72
      %p76 = scmp.eq.s32.totalorder %s15, 0
      %p77 = por %p75, %p76
      %p78 = scmp.ne.s32.totalorder %s70, %s72
      %p79 = scmp.eq.s32.totalorder %s20, 1
      %p80 = por %p78, %p79
      %p81 = scmp.ne.s32.totalorder %s72, %s73
      %p82 = scmp.eq.s32.totalorder %s20, 0
      %p83 = por %p81, %p82
      %p84 = scmp.ne.s32.totalorder %s72, %s73
      %p85 = scmp.eq.s32.totalorder %s21, 1
      %p86 = por %p84, %p85
      %p88 = scmp.ne.s32.totalorder %s73, %s87
      %p89 = scmp.eq.s32.totalorder %s21, 0
      %p90 = por %p88, %p89
      %s91 = ssub.s32 %s15, %s22
      %p92 = scmp.eq.s32.totalorder %s91, 0
      %s94 = sadd.s32 %s93, 1
      %s95 = scalar_select %p92, %s93, %s94
      %p98 = pneg %p92
      %p99 = scmp.eq.s32.totalorder %s15, 1
      %p100 = por %p98, %p99
      %p101 = scmp.ne.s32.totalorder %s93, %s96
      %p102 = scmp.eq.s32.totalorder %s15, 0
      %p103 = por %p101, %p102
      %p104 = scmp.ne.s32.totalorder %s93, %s96
      %p105 = scmp.eq.s32.totalorder %s20, 1
      %p106 = por %p104, %p105
      %p107 = scmp.ne.s32.totalorder %s96, %s97
      %p108 = scmp.eq.s32.totalorder %s20, 0
      %p109 = por %p107, %p108
      %p110 = scmp.ne.s32.totalorder %s96, %s97
      %p111 = scmp.eq.s32.totalorder %s21, 1
      %p112 = por %p110, %p111
      %p114 = scmp.ne.s32.totalorder %s97, %s113
      %p115 = scmp.eq.s32.totalorder %s21, 0
      %p116 = por %p114, %p115
      %p117 = scmp.le.s32.totalorder 1, %s15
      %p118 = scmp.lt.s32.totalorder %s15, 3
      %p119 = pnand %p117, %p118
      %p120 = pneg %p119
      // Predicated region
      $region9: #{tpu_custom_call.1} parent=5 // pred_check
        _
      $region10: #{tpu_custom_call.1} parent=5 // pred_check_branch
        %122 = sbr.rel (%p119) target = $region12
      $region11: #{tpu_custom_call.1} parent=5 // pred_region
        %s123 = ssub.s32 %s15, 1
        // Predicated region
        $region13: #{tpu_custom_call.1} parent=11 // pred_check
          %p124 = pneg %p62
        $region14: #{tpu_custom_call.1} parent=11 // pred_check_branch
          %126 = sbr.rel (%p124) target = $region16
        $region15: #{tpu_custom_call.1} parent=11 // pred_region
          _
        $region16: #{tpu_custom_call.1} parent=11 // pred_fallthru
          _
        // Predicated region
        $region17: #{tpu_custom_call.1} parent=11 // pred_check
          %p127 = pneg %p83
        $region18: #{tpu_custom_call.1} parent=11 // pred_check_branch
          %129 = sbr.rel (%p127) target = $region20
        $region19: #{tpu_custom_call.1} parent=11 // pred_region
          _
        $region20: #{tpu_custom_call.1} parent=11 // pred_fallthru
          _
      $region12: #{tpu_custom_call.1} parent=5 // pred_fallthru
        _
      %p130 = scmp.lt.s32.totalorder %s15, 2
      // Predicated region
      $region21: #{tpu_custom_call.1} parent=5 // pred_check
        %p131 = pneg %p130
      $region22: #{tpu_custom_call.1} parent=5 // pred_check_branch
        %133 = sbr.rel (%p131) target = $region24
      $region23: #{tpu_custom_call.1} parent=5 // pred_region
        // Predicated region
        $region25: #{tpu_custom_call.1} parent=23 // pred_check
          %p134 = pneg %p35
        $region26: #{tpu_custom_call.1} parent=23 // pred_check_branch
          %136 = sbr.rel (%p134) target = $region28
        $region27: #{tpu_custom_call.1} parent=23 // pred_region
          %s137 = sand.u32 %s25, 1
          %s138 = scalar_lea.sflag [#allocation3], %s137
          %s139 = sand.u32 %s25, 1
          %s140 = smul.addr %s139, 8
          %s141 = scalar_lea.vmem [#allocation2], %s140
          %143 = vsyncadd %s138, 0
          %s144 = smul.addr %s15, 4
          %s145 = smul.addr %s144, 2
          %s146 = scalar_lea.hbm %s0, %s145
          %s147 = sshll.u32 %s146, 4
          %s148 = int_to_ptr.hbm [resolvable:$true] %s147
          %s149 = sshll.u32 %s141, 4
          %s150 = int_to_ptr.vmem [resolvable:$true] %s149
          %155 = dma.hbm_to_vmem [thread:$0]  %s148, 128, %s150, %s138, 64, 64, 4
        $region28: #{tpu_custom_call.1} parent=23 // pred_fallthru
          _
      $region24: #{tpu_custom_call.1} parent=5 // pred_fallthru
        _
      %p156 = scmp.le.s32.totalorder 1, %s15
      %p157 = scmp.lt.s32.totalorder %s15, 3
      %p158 = pnand %p156, %p157
      %p159 = pneg %p158
      // Predicated region
      $region29: #{tpu_custom_call.1} parent=5 // pred_check
        _
      $region30: #{tpu_custom_call.1} parent=5 // pred_check_branch
        %161 = sbr.rel (%p158) target = $region32
      $region31: #{tpu_custom_call.1} parent=5 // pred_region
        %s162 = ssub.s32 %s15, 1
        %s163 = sand.u32 %s28, 1
        %s164 = scalar_lea.sflag [#allocation3], %s163
        %s165 = sand.u32 %s28, 1
        %s166 = smul.addr %s165, 8
        %s167 = scalar_lea.vmem [#allocation2], %s166
        // Predicated region
        $region33: #{tpu_custom_call.1} parent=31 // pred_check
          %p168 = pneg %p41
        $region34: #{tpu_custom_call.1} parent=31 // pred_check_branch
          %170 = sbr.rel (%p168) target = $region36
        $region35: #{tpu_custom_call.1} parent=31 // pred_region
          %172 = dma.done %s164, 128
        $region36: #{tpu_custom_call.1} parent=31 // pred_fallthru
          _
        %s173 = sand.u32 %s28, 1
        %s174 = scalar_lea.sflag [#allocation3], %s173
        %s175 = sand.u32 %s28, 1
        %s176 = smul.addr %s175, 8
        %s177 = scalar_lea.vmem [#allocation2], %s176
        %p178 = pneg %p41
        %p179 = pneg %p38
        %p180 = pneg %p62
        %p181 = pneg %p59
        %p182 = pneg %p83
        %p183 = pneg %p80
        %p184 = pneg %p109
        %p185 = pneg %p106
        %s186 = sand.u32 %s96, 1
        %s187 = scalar_lea.sflag [#allocation4], %s186
        %s188 = sand.u32 %s96, 1
        %s189 = smul.addr %s188, 8
        %s190 = scalar_lea.vmem [#allocation5], %s189
        %v191 = vld [vmem:[%s167] sm:$0xf]
        %v192 = vld [vmem:[%s167 + $0x4] sm:$0xf]
        %195 = vst [vmem:[#allocation1] ss:$4 sm:$0xff] %v191
        %v196 = vld.sshfl [vmem:[#allocation1] sm:$0xff pattern:$0x73625140]
        %v197 = vld.sshfl [vmem:[#allocation1 + $0x8] sm:$0xff pattern:$0x73625140]
        %s198 = scalar_lea.vmem [#allocation1], 32
        %199 = vst [vmem:[%s198] ss:$4 sm:$0xff] %v192
        %v200 = vld.sshfl [vmem:[#allocation1 + $0x20] sm:$0xff pattern:$0x73625140]
        %v201 = vld.sshfl [vmem:[#allocation1 + $0x28] sm:$0xff pattern:$0x73625140]
        %vm206 = vcmask 1041408
        %v207 = vsel %vm206, %v196, 0.0
        %v208 = vsel %vm206, %v197, 0.0
        %v209 = vadd.f32 %v207, %v208
        %210 = vadd.xlane.f32.xlu0 %v209
        %v211 = vpop.xlane.xlu0 %210
        %v212 = vsel %vm206, %v200, 0.0
        %v213 = vsel %vm206, %v201, 0.0
        %v214 = vadd.f32 %v212, %v213
        %215 = vadd.xlane.f32.xlu0 %v214
        %v216 = vpop.xlane.xlu0 %215
        %v217 = vsel %vm206, %v211, 0.0
        %v218 = vrot.slane %v217, 4
        %v219 = vadd.f32 %v217, %v218
        %v220 = vrot.slane %v219, 2
        %v221 = vadd.f32 %v219, %v220
        %v222 = vrot.slane %v221, 1
        %v223 = vadd.f32 %v221, %v222
        %v224 = vsel %vm206, %v216, 0.0
        %v225 = vrot.slane %v224, 4
        %v226 = vadd.f32 %v224, %v225
        %v227 = vrot.slane %v226, 2
        %v228 = vadd.f32 %v226, %v227
        %v229 = vrot.slane %v228, 1
        %v230 = vadd.f32 %v228, %v229
        %v231 = vmul.f32 %v223, 0.001953125
        %v232 = vmul.f32 %v230, 0.001953125
        %v233 = vsub.f32 %v191, %v231
        %v234 = vsub.f32 %v192, %v232
        %v235 = vmul.f32 %v233, %v233
        %v236 = vmul.f32 %v234, %v234
        %239 = vst [vmem:[#allocation1] ss:$4 sm:$0xff] %v235
        %v240 = vld.sshfl [vmem:[#allocation1] sm:$0xff pattern:$0x73625140]
        %v241 = vld.sshfl [vmem:[#allocation1 + $0x8] sm:$0xff pattern:$0x73625140]
        %s242 = scalar_lea.vmem [#allocation1], 32
        %243 = vst [vmem:[%s242] ss:$4 sm:$0xff] %v236
        %v244 = vld.sshfl [vmem:[#allocation1 + $0x20] sm:$0xff pattern:$0x73625140]
        %v245 = vld.sshfl [vmem:[#allocation1 + $0x28] sm:$0xff pattern:$0x73625140]
        %v250 = vsel %vm206, %v240, 0.0
        %v251 = vsel %vm206, %v241, 0.0
        %v252 = vadd.f32 %v250, %v251
        %253 = vadd.xlane.f32.xlu0 %v252
        %v254 = vpop.xlane.xlu0 %253
        %v255 = vsel %vm206, %v244, 0.0
        %v256 = vsel %vm206, %v245, 0.0
        %v257 = vadd.f32 %v255, %v256
        %258 = vadd.xlane.f32.xlu0 %v257
        %v259 = vpop.xlane.xlu0 %258
        %v260 = vsel %vm206, %v254, 0.0
        %v261 = vrot.slane %v260, 4
        %v262 = vadd.f32 %v260, %v261
        %v263 = vrot.slane %v262, 2
        %v264 = vadd.f32 %v262, %v263
        %v265 = vrot.slane %v264, 1
        %v266 = vadd.f32 %v264, %v265
        %v267 = vsel %vm206, %v259, 0.0
        %v268 = vrot.slane %v267, 4
        %v269 = vadd.f32 %v267, %v268
        %v270 = vrot.slane %v269, 2
        %v271 = vadd.f32 %v269, %v270
        %v272 = vrot.slane %v271, 1
        %v273 = vadd.f32 %v271, %v272
        %v274 = vmul.f32 %v266, 0.0019569471
        %v275 = vmul.f32 %v273, 0.0019569471
        %v276 = vadd.f32 %v274, 1e-05
        %v277 = vadd.f32 %v275, 1e-05
        %v278 = vrsqrt.pop %v276
        %v279 = vmul.f32 %v278, %v276
        %v280 = vmul.f32 %v279, %v278
        %v281 = vmul.f32 0.5, %v280
        %v282 = vsub.f32 1.5, %v281
        %v283 = vmul.f32 %v278, %v282
        %vm284 = vweird.f32 %v276
        %vm285 = vweird.f32 %v278
        %vm286 = vmor %vm284, %vm285
        %v287 = vsel %vm286, %v278, %v283
        %v288 = vrsqrt.pop %v277
        %v289 = vmul.f32 %v288, %v277
        %v290 = vmul.f32 %v289, %v288
        %v291 = vmul.f32 0.5, %v290
        %v292 = vsub.f32 1.5, %v291
        %v293 = vmul.f32 %v288, %v292
        %vm294 = vweird.f32 %v277
        %vm295 = vweird.f32 %v288
        %vm296 = vmor %vm294, %vm295
        %v297 = vsel %vm296, %v288, %v293
        %v298 = vmul.f32 %v233, %v287
        %v299 = vmul.f32 %v234, %v297
        %v300 = vld [vmem:[%s1] sm:$0x3]
        %v301 = vld [vmem:[%s1 + $0x2] sm:$0x3]
        %303 = vset.pattern.permute.xlu0 0
        %304 = vperm.xlu0 %303, %v300
        %v305 = vpop.permute.xlu0 %304
        %307 = vset.pattern.permute.xlu0 0
        %308 = vperm.xlu0 %307, %v301
        %v309 = vpop.permute.xlu0 %308
        %v311 = vunpack.c.l.s4 269488144
        %v312 = vunpack.c.0.s8 %v311
        %v313 = vperm.slane %v305, %v312
        %v315 = vunpack.c.l.s4 269488144
        %v316 = vunpack.c.0.s8 %v315
        %v317 = vperm.slane %v309, %v316
        %v320 = vmul.f32 %v298, %v313
        %v321 = vmul.f32 %v299, %v317
        %v322 = vld [vmem:[%s2] sm:$0x3]
        %v323 = vld [vmem:[%s2 + $0x2] sm:$0x3]
        %325 = vset.pattern.permute.xlu0 0
        %326 = vperm.xlu0 %325, %v322
        %v327 = vpop.permute.xlu0 %326
        %329 = vset.pattern.permute.xlu0 0
        %330 = vperm.xlu0 %329, %v323
        %v331 = vpop.permute.xlu0 %330
        %v333 = vunpack.c.l.s4 269488144
        %v334 = vunpack.c.0.s8 %v333
        %v335 = vperm.slane %v327, %v334
        %v337 = vunpack.c.l.s4 269488144
        %v338 = vunpack.c.0.s8 %v337
        %v339 = vperm.slane %v331, %v338
        %v342 = vadd.f32 %v320, %v335
        %v343 = vadd.f32 %v321, %v339
        %344 = vst [vmem:[%s190] sm:$0xf] %v342
        %345 = vst [vmem:[%s190 + $0x4] sm:$0xf] %v343
        %s346 = sand.u32 %s96, 1
        %s347 = scalar_lea.sflag [#allocation4], %s346
        %s348 = sand.u32 %s96, 1
        %s349 = smul.addr %s348, 8
        %s350 = scalar_lea.vmem [#allocation5], %s349
        // Predicated region
        $region37: #{tpu_custom_call.1} parent=31 // pred_check
          %p351 = pneg %p106
        $region38: #{tpu_custom_call.1} parent=31 // pred_check_branch
          %353 = sbr.rel (%p351) target = $region40
        $region39: #{tpu_custom_call.1} parent=31 // pred_region
          %355 = vsyncadd %s347, 0
          %s356 = smul.addr %s20, 4
          %s357 = smul.addr %s356, 2
          %s358 = scalar_lea.hbm %s3, %s357
          %s359 = sshll.u32 %s350, 4
          %s360 = int_to_ptr.vmem [resolvable:$true] %s359
          %s361 = sshll.u32 %s358, 4
          %s362 = int_to_ptr.hbm [resolvable:$true] %s361
          %367 = dma.vmem_to_hbm [thread:$0]  %s360, 128, %s362, %s347, 64, 64, 4
        $region40: #{tpu_custom_call.1} parent=31 // pred_fallthru
          _
      $region32: #{tpu_custom_call.1} parent=5 // pred_fallthru
        _
      %p368 = scmp.le.s32.totalorder 2, %s15
      // Predicated region
      $region41: #{tpu_custom_call.1} parent=5 // pred_check
        %p369 = pneg %p368
      $region42: #{tpu_custom_call.1} parent=5 // pred_check_branch
        %371 = sbr.rel (%p369) target = $region44
      $region43: #{tpu_custom_call.1} parent=5 // pred_region
        %s372 = ssub.s32 %s15, 2
        // Predicated region
        $region45: #{tpu_custom_call.1} parent=43 // pred_check
          %p373 = pneg %p112
        $region46: #{tpu_custom_call.1} parent=43 // pred_check_branch
          %375 = sbr.rel (%p373) target = $region48
        $region47: #{tpu_custom_call.1} parent=43 // pred_region
          %s376 = sand.u32 %s97, 1
          %s377 = scalar_lea.sflag [#allocation4], %s376
          %s378 = sand.u32 %s97, 1
          %s379 = smul.addr %s378, 8
          %s380 = scalar_lea.vmem [#allocation5], %s379
          %382 = dma.done %s377, 128
        $region48: #{tpu_custom_call.1} parent=43 // pred_fallthru
          _
      $region44: #{tpu_custom_call.1} parent=5 // pred_fallthru
        _
    $region6: #{tpu_custom_call.1} parent=1 // loop_footer
      %s19 = sadd.s32 1, %s15
    $region7: #{tpu_custom_call.1} parent=1 // loop_footer_branch
      %14 = sbr.rel target = $region3
    $region8: #{tpu_custom_call.1} parent=1 // loop_exit
      _
    %383 = vsyncpa [#allocation3], 1
    %s384 = scalar_lea.sflag [#allocation3], 1
    %385 = vsyncpa %s384, 1
    %386 = vsyncpa [#allocation4], 1
    %s387 = scalar_lea.sflag [#allocation4], 1
    %388 = vsyncpa %s387, 1

</llo_original>
